<compile_context>
chip_gen: v6e
topology: v6e:2x2x1
jax: 0.10.0
libtpu: 0.0.40
codegen_flags: <defaults>
</compile_context>

<pallas_src>
import functools

import jax
import jax.numpy as jnp
from jax import lax
from jax.experimental import pallas as pl
from jax.experimental.pallas import tpu as pltpu


def _sepconv_kernel(x_ref, wf_ref, bf_ref, o_ref, xpad_ref, *, h, w, k, pad):
    # x_ref   : (Bt, Cin, H*W)        f32, unpadded input, spatial dims flattened (lane-dense DMA)
    # wf_ref  : (K, Cout, Cin)        bf16, fused weights  Wf[kh] = wp * wd[:, kh]
    # bf_ref  : (Cout, 1)             f32,  fused bias     bf = bp + wp @ bd
    # o_ref   : (Bt, Cout, Hout*Wout) flat, lane-dense output slab
    # xpad_ref: (Bt, Cin, Hp*Wp)      bf16 VMEM scratch holding the zero-padded activations
    bt, cin, _ = x_ref.shape
    cout = wf_ref.shape[1]
    hp, wpd = h + 2 * pad, w + 2 * pad
    h_out = hp - k + 1
    l_out = h_out * wpd                       # == o_ref.shape[2]

    # ---- Build the zero-padded, spatially-flat bf16 activations in VMEM. ----
    # Zero ONLY the halo lanes (interior lanes are fully overwritten by the row copies):
    #   prefix : top pad rows + left pad of the first interior row
    #   gaps   : right pad of row hh + left pad of row hh+1   (2*pad lanes, H-1 of them)
    #   suffix : right pad of the last interior row + bottom pad rows
    def _zero(lo, hi):
        xpad_ref[:, :, lo:hi] = jnp.zeros((bt, cin, hi - lo), jnp.bfloat16)

    if pad > 0:
        _zero(0, pad * wpd + pad)
        for hh in range(h - 1):
            g0 = (hh + pad) * wpd + pad + w
            _zero(g0, g0 + 2 * pad)
        _zero((h - 1 + pad) * wpd + pad + w, hp * wpd)

    x = x_ref[...].astype(jnp.bfloat16)       # single f32->bf16 cast per step
    for hh in range(h):                       # static unroll: one lane-slice copy per row
        dst = (hh + pad) * wpd + pad
        xpad_ref[:, :, dst:dst + w] = x[:, :, hh * w:(hh + 1) * w]

    # ---- Fused depthwise + pointwise: K accumulated MXU matmuls (bf16 in, f32 acc). ----
    # Tap kh of the (K,1) depthwise conv is the flat slice [kh*Wp : kh*Wp + Hout*Wp] of the
    # padded plane; the per-channel depthwise scale is folded into Wf[kh].
    wf = wf_ref[...]                                          # (K, Cout, Cin) bf16
    bias = jnp.broadcast_to(bf_ref[...], (cout, l_out))       # hoisted: one broadcast per step

    def one_batch(b):
        xb = xpad_ref[b]                                      # (Cin, Hp*Wp) bf16
        acc = jnp.dot(wf[0], xb[:, 0:l_out],
                      preferred_element_type=jnp.float32)
        for kh in range(1, k):
            acc = acc + jnp.dot(wf[kh], xb[:, kh * wpd:kh * wpd + l_out],
                                preferred_element_type=jnp.float32)
        o_ref[b] = (acc + bias).astype(o_ref.dtype)           # (Cout, Hout*Wout), lane-dense

    if bt <= 4:
        for b in range(bt):                                   # tiny tile: static unroll
            one_batch(b)
    else:
        def body(b, carry):                                   # large tile: bound live ranges
            one_batch(b)
            return carry
        lax.fori_loop(0, bt, body, 0)


def separable_conv2d(x, w_depth, b_depth, w_point, b_point, *,
                     kernel_size=3, padding=1, batch_tile=None):
    """x: (N, Cin, H, W) float32.  Returns (N, Cout, H_out, W_out)."""
    n, cin, h, w = x.shape
    cout = w_point.shape[0]
    k, p = kernel_size, padding
    hp, wpd = h + 2 * p, w + 2 * p
    h_out = hp - k + 1                        # kernel height = kernel_size
    w_out = wpd                               # kernel width  = 1
    l_out = h_out * w_out

    # Fuse the depthwise (K,1) conv into the 1x1 pointwise conv (exact):
    #   Wf[kh][co, ci] = wp[co, ci] * wd[ci, kh]        bf = bp + wp @ bd
    wf = jnp.transpose(w_point[:, :, None] * w_depth[None, :, :], (2, 0, 1))  # (K, Cout, Cin)
    wf = wf.astype(jnp.bfloat16)
    bf = (b_point + w_point @ b_depth).astype(jnp.float32)                    # (Cout, 1)

    x_flat = x.reshape(n, cin, h * w)         # free reshape (contiguous trailing dims)

    # Per-generation VMEM sizing: query capacity, cap the scoped limit, budget the tile.
    try:
        vmem_cap = int(pltpu.get_tpu_info().vmem_capacity_bytes)
    except Exception:                         # CPU interpret / old runtime fallback
        vmem_cap = 64 * 1024 * 1024
    vmem_limit = min(int(0.75 * vmem_cap), 100 * 1024 * 1024)   # ~48 MiB on v7x, ~96 MiB v5e/v6e

    # Per-batch-element per-step footprint, including double-buffered input/output blocks
    # and the single-buffered bf16 scratch.
    per_b = (2 * 4 * cin * h * w              # input block, f32, x2 pipeline buffers
             + 2 * 4 * cout * l_out           # output block, f32, x2 pipeline buffers
             + 2 * cin * hp * wpd)            # padded scratch, bf16

    if batch_tile is None:
        budget = int(0.6 * vmem_limit)
        # Keep >= 2 grid steps so the "parallel" batch axis can shard across v7x's 2 TCs.
        bt_cap = max(1, n // 2)
        batch_tile = 1
        for d in range(1, bt_cap + 1):
            if n % d == 0 and d * per_b <= budget:
                batch_tile = d
    bt = batch_tile
    assert n % bt == 0, (n, bt)

    kernel = functools.partial(_sepconv_kernel, h=h, w=w, k=k, pad=p)
    out_flat = pl.pallas_call(
        kernel,
        out_shape=jax.ShapeDtypeStruct((n, cout, l_out), x.dtype),
        grid=(n // bt,),
        in_specs=[
            pl.BlockSpec((bt, cin, h * w), lambda i: (i, 0, 0)),
            pl.BlockSpec((k, cout, cin), lambda i: (0, 0, 0)),
            pl.BlockSpec((cout, 1), lambda i: (0, 0)),
        ],
        out_specs=pl.BlockSpec((bt, cout, l_out), lambda i: (i, 0, 0)),
        scratch_shapes=[pltpu.VMEM((bt, cin, hp * wpd), jnp.bfloat16)],
        compiler_params=pltpu.CompilerParams(
            dimension_semantics=("parallel",),
            vmem_limit_bytes=vmem_limit),
    )(x_flat, wf, bf)

    return out_flat.reshape(n, cout, h_out, w_out)


def _reference(x, w_depth, b_depth, w_point, b_point, kernel_size=3, padding=1):
    """Pure-JAX reference (mirrors the PyTorch SeparableConv2d forward, stride=1)."""
    cin = x.shape[1]
    cout = w_point.shape[0]
    wd4 = w_depth.reshape(cin, 1, kernel_size, 1)            # OIHW, groups=Cin
    y = jax.lax.conv_general_dilated(
        x, wd4, window_strides=(1, 1),
        padding=((padding, padding), (padding, padding)),
        dimension_numbers=("NCHW", "OIHW", "NCHW"),
        feature_group_count=cin)
    y = y + b_depth.reshape(1, cin, 1, 1)
    wp4 = w_point.reshape(cout, cin, 1, 1)
    z = jax.lax.conv_general_dilated(
        y, wp4, window_strides=(1, 1), padding="VALID",
        dimension_numbers=("NCHW", "OIHW", "NCHW"))
    return z + b_point.reshape(1, cout, 1, 1)


if __name__ == "__main__":
    # Small, deterministic setup: batch=2, in_channels=4, out_channels=8, 16x16.
    key = jax.random.PRNGKey(0)
    k_x, k_wd, k_bd, k_wp, k_bp = jax.random.split(key, 5)

    N, CIN, COUT, H, W, K, PAD = 2, 4, 8, 16, 16, 3, 1

    x = jax.random.normal(k_x, (N, CIN, H, W), dtype=jnp.float32)
    # Parameter shapes follow nn.Conv2d:
    #   depth.weight: (Cin, 1, K, 1)    -> stored flat as (Cin, K)
    #   depth.bias  : (Cin,)            -> stored as (Cin, 1)
    #   point.weight: (Cout, Cin, 1, 1) -> stored as (Cout, Cin)
    #   point.bias  : (Cout,)           -> stored as (Cout, 1)
    w_depth = 0.3 * jax.random.normal(k_wd, (CIN, K), dtype=jnp.float32)
    b_depth = 0.1 * jax.random.normal(k_bd, (CIN, 1), dtype=jnp.float32)
    w_point = 0.3 * jax.random.normal(k_wp, (COUT, CIN), dtype=jnp.float32)
    b_point = 0.1 * jax.random.normal(k_bp, (COUT, 1), dtype=jnp.float32)

    out = separable_conv2d(x, w_depth, b_depth, w_point, b_point,
                           kernel_size=K, padding=PAD)
    out = jax.block_until_ready(out)

    ref = _reference(x, w_depth, b_depth, w_point, b_point,
                     kernel_size=K, padding=PAD)
    ref = jax.block_until_ready(ref)

    # (K,1) depthwise with padding on both dims => width grows by 2*pad, height unchanged.
    assert out.shape == (N, COUT, H, W + 2 * PAD), out.shape
    assert jnp.allclose(out, ref, rtol=2e-2, atol=2e-2), (
        float(jnp.max(jnp.abs(out - ref))))
    print("KERNEL_OK")
</pallas_src>

<mosaic_0001>
module attributes {stable_mosaic.version = 11 : i64} {
  func.func @_sepconv_kernel(%arg0: i32, %arg1: memref<1x4x256xf32, #tpu.memory_space<vmem>>, %arg2: memref<3x8x4xbf16, #tpu.memory_space<vmem>>, %arg3: memref<8x1xf32, #tpu.memory_space<vmem>>, %arg4: memref<1x8x288xf32, #tpu.memory_space<vmem>>, %arg5: memref<1x4x324xbf16, #tpu.memory_space<vmem>>) attributes {dimension_semantics = [#tpu.dimension_semantics<parallel>], iteration_bounds = array<i64: 2>, scalar_prefetch = 0 : i64, scratch_operands = 1 : i64, tpu.core_type = #tpu.core_type<tc>, window_params = [{transform_indices = @transform_0, window_bounds = array<i64: 1, 4, 256>}, {pipeline_mode = #tpu.pipeline_mode<synchronous>, transform_indices = @transform_1, window_bounds = array<i64: 3, 8, 4>}, {pipeline_mode = #tpu.pipeline_mode<synchronous>, transform_indices = @transform_2, window_bounds = array<i64: 8, 1>}, {transform_indices = @transform_3, window_bounds = array<i64: 1, 8, 288>}]} {
    %cst = arith.constant 0.000000e+00 : bf16
    %0 = vector.broadcast %cst : bf16 to vector<1x4x19xbf16>
    %c0 = arith.constant 0 : index
    %c0_0 = arith.constant 0 : index
    %c0_1 = arith.constant 0 : index
    %1 = vector.load %arg5[%c0, %c0_0, %c0_1] : memref<1x4x324xbf16, #tpu.memory_space<vmem>>, vector<1x4x19xbf16>
    tpu.vector_store %arg5[%c0, %c0_0, %c0_1], %0 {strides = array<i32>} : memref<1x4x324xbf16, #tpu.memory_space<vmem>>, vector<1x4x19xbf16>,
    %cst_2 = arith.constant 0.000000e+00 : bf16
    %2 = vector.broadcast %cst_2 : bf16 to vector<1x4x2xbf16>
    %c0_3 = arith.constant 0 : index
    %c0_4 = arith.constant 0 : index
    %c35 = arith.constant 35 : index
    %3 = vector.load %arg5[%c0_3, %c0_4, %c35] : memref<1x4x324xbf16, #tpu.memory_space<vmem>>, vector<1x4x2xbf16>
    tpu.vector_store %arg5[%c0_3, %c0_4, %c35], %2 {strides = array<i32>} : memref<1x4x324xbf16, #tpu.memory_space<vmem>>, vector<1x4x2xbf16>,
    %cst_5 = arith.constant 0.000000e+00 : bf16
    %4 = vector.broadcast %cst_5 : bf16 to vector<1x4x2xbf16>
    %c0_6 = arith.constant 0 : index
    %c0_7 = arith.constant 0 : index
    %c53 = arith.constant 53 : index
    %5 = vector.load %arg5[%c0_6, %c0_7, %c53] : memref<1x4x324xbf16, #tpu.memory_space<vmem>>, vector<1x4x2xbf16>
    tpu.vector_store %arg5[%c0_6, %c0_7, %c53], %4 {strides = array<i32>} : memref<1x4x324xbf16, #tpu.memory_space<vmem>>, vector<1x4x2xbf16>,
    %cst_8 = arith.constant 0.000000e+00 : bf16
    %6 = vector.broadcast %cst_8 : bf16 to vector<1x4x2xbf16>
    %c0_9 = arith.constant 0 : index
    %c0_10 = arith.constant 0 : index
    %c71 = arith.constant 71 : index
    %7 = vector.load %arg5[%c0_9, %c0_10, %c71] : memref<1x4x324xbf16, #tpu.memory_space<vmem>>, vector<1x4x2xbf16>
    tpu.vector_store %arg5[%c0_9, %c0_10, %c71], %6 {strides = array<i32>} : memref<1x4x324xbf16, #tpu.memory_space<vmem>>, vector<1x4x2xbf16>,
    %cst_11 = arith.constant 0.000000e+00 : bf16
    %8 = vector.broadcast %cst_11 : bf16 to vector<1x4x2xbf16>
    %c0_12 = arith.constant 0 : index
    %c0_13 = arith.constant 0 : index
    %c89 = arith.constant 89 : index
    %9 = vector.load %arg5[%c0_12, %c0_13, %c89] : memref<1x4x324xbf16, #tpu.memory_space<vmem>>, vector<1x4x2xbf16>
    tpu.vector_store %arg5[%c0_12, %c0_13, %c89], %8 {strides = array<i32>} : memref<1x4x324xbf16, #tpu.memory_space<vmem>>, vector<1x4x2xbf16>,
    %cst_14 = arith.constant 0.000000e+00 : bf16
    %10 = vector.broadcast %cst_14 : bf16 to vector<1x4x2xbf16>
    %c0_15 = arith.constant 0 : index
    %c0_16 = arith.constant 0 : index
    %c107 = arith.constant 107 : index
    %11 = vector.load %arg5[%c0_15, %c0_16, %c107] : memref<1x4x324xbf16, #tpu.memory_space<vmem>>, vector<1x4x2xbf16>
    tpu.vector_store %arg5[%c0_15, %c0_16, %c107], %10 {strides = array<i32>} : memref<1x4x324xbf16, #tpu.memory_space<vmem>>, vector<1x4x2xbf16>,
    %cst_17 = arith.constant 0.000000e+00 : bf16
    %12 = vector.broadcast %cst_17 : bf16 to vector<1x4x2xbf16>
    %c0_18 = arith.constant 0 : index
    %c0_19 = arith.constant 0 : index
    %c125 = arith.constant 125 : index
    %13 = vector.load %arg5[%c0_18, %c0_19, %c125] : memref<1x4x324xbf16, #tpu.memory_space<vmem>>, vector<1x4x2xbf16>
    tpu.vector_store %arg5[%c0_18, %c0_19, %c125], %12 {strides = array<i32>} : memref<1x4x324xbf16, #tpu.memory_space<vmem>>, vector<1x4x2xbf16>,
    %cst_20 = arith.constant 0.000000e+00 : bf16
    %14 = vector.broadcast %cst_20 : bf16 to vector<1x4x2xbf16>
    %c0_21 = arith.constant 0 : index
    %c0_22 = arith.constant 0 : index
    %c143 = arith.constant 143 : index
    %15 = vector.load %arg5[%c0_21, %c0_22, %c143] : memref<1x4x324xbf16, #tpu.memory_space<vmem>>, vector<1x4x2xbf16>
    tpu.vector_store %arg5[%c0_21, %c0_22, %c143], %14 {strides = array<i32>} : memref<1x4x324xbf16, #tpu.memory_space<vmem>>, vector<1x4x2xbf16>,
    %cst_23 = arith.constant 0.000000e+00 : bf16
    %16 = vector.broadcast %cst_23 : bf16 to vector<1x4x2xbf16>
    %c0_24 = arith.constant 0 : index
    %c0_25 = arith.constant 0 : index
    %c161 = arith.constant 161 : index
    %17 = vector.load %arg5[%c0_24, %c0_25, %c161] : memref<1x4x324xbf16, #tpu.memory_space<vmem>>, vector<1x4x2xbf16>
    tpu.vector_store %arg5[%c0_24, %c0_25, %c161], %16 {strides = array<i32>} : memref<1x4x324xbf16, #tpu.memory_space<vmem>>, vector<1x4x2xbf16>,
    %cst_26 = arith.constant 0.000000e+00 : bf16
    %18 = vector.broadcast %cst_26 : bf16 to vector<1x4x2xbf16>
    %c0_27 = arith.constant 0 : index
    %c0_28 = arith.constant 0 : index
    %c179 = arith.constant 179 : index
    %19 = vector.load %arg5[%c0_27, %c0_28, %c179] : memref<1x4x324xbf16, #tpu.memory_space<vmem>>, vector<1x4x2xbf16>
    tpu.vector_store %arg5[%c0_27, %c0_28, %c179], %18 {strides = array<i32>} : memref<1x4x324xbf16, #tpu.memory_space<vmem>>, vector<1x4x2xbf16>,
    %cst_29 = arith.constant 0.000000e+00 : bf16
    %20 = vector.broadcast %cst_29 : bf16 to vector<1x4x2xbf16>
    %c0_30 = arith.constant 0 : index
    %c0_31 = arith.constant 0 : index
    %c197 = arith.constant 197 : index
    %21 = vector.load %arg5[%c0_30, %c0_31, %c197] : memref<1x4x324xbf16, #tpu.memory_space<vmem>>, vector<1x4x2xbf16>
    tpu.vector_store %arg5[%c0_30, %c0_31, %c197], %20 {strides = array<i32>} : memref<1x4x324xbf16, #tpu.memory_space<vmem>>, vector<1x4x2xbf16>,
    %cst_32 = arith.constant 0.000000e+00 : bf16
    %22 = vector.broadcast %cst_32 : bf16 to vector<1x4x2xbf16>
    %c0_33 = arith.constant 0 : index
    %c0_34 = arith.constant 0 : index
    %c215 = arith.constant 215 : index
    %23 = vector.load %arg5[%c0_33, %c0_34, %c215] : memref<1x4x324xbf16, #tpu.memory_space<vmem>>, vector<1x4x2xbf16>
    tpu.vector_store %arg5[%c0_33, %c0_34, %c215], %22 {strides = array<i32>} : memref<1x4x324xbf16, #tpu.memory_space<vmem>>, vector<1x4x2xbf16>,
    %cst_35 = arith.constant 0.000000e+00 : bf16
    %24 = vector.broadcast %cst_35 : bf16 to vector<1x4x2xbf16>
    %c0_36 = arith.constant 0 : index
    %c0_37 = arith.constant 0 : index
    %c233 = arith.constant 233 : index
    %25 = vector.load %arg5[%c0_36, %c0_37, %c233] : memref<1x4x324xbf16, #tpu.memory_space<vmem>>, vector<1x4x2xbf16>
    tpu.vector_store %arg5[%c0_36, %c0_37, %c233], %24 {strides = array<i32>} : memref<1x4x324xbf16, #tpu.memory_space<vmem>>, vector<1x4x2xbf16>,
    %cst_38 = arith.constant 0.000000e+00 : bf16
    %26 = vector.broadcast %cst_38 : bf16 to vector<1x4x2xbf16>
    %c0_39 = arith.constant 0 : index
    %c0_40 = arith.constant 0 : index
    %c251 = arith.constant 251 : index
    %27 = vector.load %arg5[%c0_39, %c0_40, %c251] : memref<1x4x324xbf16, #tpu.memory_space<vmem>>, vector<1x4x2xbf16>
    tpu.vector_store %arg5[%c0_39, %c0_40, %c251], %26 {strides = array<i32>} : memref<1x4x324xbf16, #tpu.memory_space<vmem>>, vector<1x4x2xbf16>,
    %cst_41 = arith.constant 0.000000e+00 : bf16
    %28 = vector.broadcast %cst_41 : bf16 to vector<1x4x2xbf16>
    %c0_42 = arith.constant 0 : index
    %c0_43 = arith.constant 0 : index
    %c269 = arith.constant 269 : index
    %29 = vector.load %arg5[%c0_42, %c0_43, %c269] : memref<1x4x324xbf16, #tpu.memory_space<vmem>>, vector<1x4x2xbf16>
    tpu.vector_store %arg5[%c0_42, %c0_43, %c269], %28 {strides = array<i32>} : memref<1x4x324xbf16, #tpu.memory_space<vmem>>, vector<1x4x2xbf16>,
    %cst_44 = arith.constant 0.000000e+00 : bf16
    %30 = vector.broadcast %cst_44 : bf16 to vector<1x4x2xbf16>
    %c0_45 = arith.constant 0 : index
    %c0_46 = arith.constant 0 : index
    %c287 = arith.constant 287 : index
    %31 = vector.load %arg5[%c0_45, %c0_46, %c287] : memref<1x4x324xbf16, #tpu.memory_space<vmem>>, vector<1x4x2xbf16>
    tpu.vector_store %arg5[%c0_45, %c0_46, %c287], %30 {strides = array<i32>} : memref<1x4x324xbf16, #tpu.memory_space<vmem>>, vector<1x4x2xbf16>,
    %cst_47 = arith.constant 0.000000e+00 : bf16
    %32 = vector.broadcast %cst_47 : bf16 to vector<1x4x19xbf16>
    %c0_48 = arith.constant 0 : index
    %c0_49 = arith.constant 0 : index
    %c305 = arith.constant 305 : index
    %33 = vector.load %arg5[%c0_48, %c0_49, %c305] : memref<1x4x324xbf16, #tpu.memory_space<vmem>>, vector<1x4x19xbf16>
    tpu.vector_store %arg5[%c0_48, %c0_49, %c305], %32 {strides = array<i32>} : memref<1x4x324xbf16, #tpu.memory_space<vmem>>, vector<1x4x19xbf16>,
    %c0_50 = arith.constant 0 : index
    %c0_51 = arith.constant 0 : index
    %c0_52 = arith.constant 0 : index
    %34 = vector.load %arg1[%c0_50, %c0_51, %c0_52] : memref<1x4x256xf32, #tpu.memory_space<vmem>>, vector<1x4x256xf32>
    %35 = arith.truncf %34 : vector<1x4x256xf32> to vector<1x4x256xbf16>
    %36 = vector.extract_strided_slice %35 {offsets = [0, 0, 0], sizes = [1, 4, 16], strides = [1, 1, 1]} : vector<1x4x256xbf16> to vector<1x4x16xbf16>
    %c0_53 = arith.constant 0 : index
    %c0_54 = arith.constant 0 : index
    %c19 = arith.constant 19 : index
    %37 = vector.load %arg5[%c0_53, %c0_54, %c19] : memref<1x4x324xbf16, #tpu.memory_space<vmem>>, vector<1x4x16xbf16>
    tpu.vector_store %arg5[%c0_53, %c0_54, %c19], %36 {strides = array<i32>} : memref<1x4x324xbf16, #tpu.memory_space<vmem>>, vector<1x4x16xbf16>,
    %38 = vector.extract_strided_slice %35 {offsets = [0, 0, 16], sizes = [1, 4, 16], strides = [1, 1, 1]} : vector<1x4x256xbf16> to vector<1x4x16xbf16>
    %c0_55 = arith.constant 0 : index
    %c0_56 = arith.constant 0 : index
    %c37 = arith.constant 37 : index
    %39 = vector.load %arg5[%c0_55, %c0_56, %c37] : memref<1x4x324xbf16, #tpu.memory_space<vmem>>, vector<1x4x16xbf16>
    tpu.vector_store %arg5[%c0_55, %c0_56, %c37], %38 {strides = array<i32>} : memref<1x4x324xbf16, #tpu.memory_space<vmem>>, vector<1x4x16xbf16>,
    %40 = vector.extract_strided_slice %35 {offsets = [0, 0, 32], sizes = [1, 4, 16], strides = [1, 1, 1]} : vector<1x4x256xbf16> to vector<1x4x16xbf16>
    %c0_57 = arith.constant 0 : index
    %c0_58 = arith.constant 0 : index
    %c55 = arith.constant 55 : index
    %41 = vector.load %arg5[%c0_57, %c0_58, %c55] : memref<1x4x324xbf16, #tpu.memory_space<vmem>>, vector<1x4x16xbf16>
    tpu.vector_store %arg5[%c0_57, %c0_58, %c55], %40 {strides = array<i32>} : memref<1x4x324xbf16, #tpu.memory_space<vmem>>, vector<1x4x16xbf16>,
    %42 = vector.extract_strided_slice %35 {offsets = [0, 0, 48], sizes = [1, 4, 16], strides = [1, 1, 1]} : vector<1x4x256xbf16> to vector<1x4x16xbf16>
    %c0_59 = arith.constant 0 : index
    %c0_60 = arith.constant 0 : index
    %c73 = arith.constant 73 : index
    %43 = vector.load %arg5[%c0_59, %c0_60, %c73] : memref<1x4x324xbf16, #tpu.memory_space<vmem>>, vector<1x4x16xbf16>
    tpu.vector_store %arg5[%c0_59, %c0_60, %c73], %42 {strides = array<i32>} : memref<1x4x324xbf16, #tpu.memory_space<vmem>>, vector<1x4x16xbf16>,
    %44 = vector.extract_strided_slice %35 {offsets = [0, 0, 64], sizes = [1, 4, 16], strides = [1, 1, 1]} : vector<1x4x256xbf16> to vector<1x4x16xbf16>
    %c0_61 = arith.constant 0 : index
    %c0_62 = arith.constant 0 : index
    %c91 = arith.constant 91 : index
    %45 = vector.load %arg5[%c0_61, %c0_62, %c91] : memref<1x4x324xbf16, #tpu.memory_space<vmem>>, vector<1x4x16xbf16>
    tpu.vector_store %arg5[%c0_61, %c0_62, %c91], %44 {strides = array<i32>} : memref<1x4x324xbf16, #tpu.memory_space<vmem>>, vector<1x4x16xbf16>,
    %46 = vector.extract_strided_slice %35 {offsets = [0, 0, 80], sizes = [1, 4, 16], strides = [1, 1, 1]} : vector<1x4x256xbf16> to vector<1x4x16xbf16>
    %c0_63 = arith.constant 0 : index
    %c0_64 = arith.constant 0 : index
    %c109 = arith.constant 109 : index
    %47 = vector.load %arg5[%c0_63, %c0_64, %c109] : memref<1x4x324xbf16, #tpu.memory_space<vmem>>, vector<1x4x16xbf16>
    tpu.vector_store %arg5[%c0_63, %c0_64, %c109], %46 {strides = array<i32>} : memref<1x4x324xbf16, #tpu.memory_space<vmem>>, vector<1x4x16xbf16>,
    %48 = vector.extract_strided_slice %35 {offsets = [0, 0, 96], sizes = [1, 4, 16], strides = [1, 1, 1]} : vector<1x4x256xbf16> to vector<1x4x16xbf16>
    %c0_65 = arith.constant 0 : index
    %c0_66 = arith.constant 0 : index
    %c127 = arith.constant 127 : index
    %49 = vector.load %arg5[%c0_65, %c0_66, %c127] : memref<1x4x324xbf16, #tpu.memory_space<vmem>>, vector<1x4x16xbf16>
    tpu.vector_store %arg5[%c0_65, %c0_66, %c127], %48 {strides = array<i32>} : memref<1x4x324xbf16, #tpu.memory_space<vmem>>, vector<1x4x16xbf16>,
    %50 = vector.extract_strided_slice %35 {offsets = [0, 0, 112], sizes = [1, 4, 16], strides = [1, 1, 1]} : vector<1x4x256xbf16> to vector<1x4x16xbf16>
    %c0_67 = arith.constant 0 : index
    %c0_68 = arith.constant 0 : index
    %c145 = arith.constant 145 : index
    %51 = vector.load %arg5[%c0_67, %c0_68, %c145] : memref<1x4x324xbf16, #tpu.memory_space<vmem>>, vector<1x4x16xbf16>
    tpu.vector_store %arg5[%c0_67, %c0_68, %c145], %50 {strides = array<i32>} : memref<1x4x324xbf16, #tpu.memory_space<vmem>>, vector<1x4x16xbf16>,
    %52 = vector.extract_strided_slice %35 {offsets = [0, 0, 128], sizes = [1, 4, 16], strides = [1, 1, 1]} : vector<1x4x256xbf16> to vector<1x4x16xbf16>
    %c0_69 = arith.constant 0 : index
    %c0_70 = arith.constant 0 : index
    %c163 = arith.constant 163 : index
    %53 = vector.load %arg5[%c0_69, %c0_70, %c163] : memref<1x4x324xbf16, #tpu.memory_space<vmem>>, vector<1x4x16xbf16>
    tpu.vector_store %arg5[%c0_69, %c0_70, %c163], %52 {strides = array<i32>} : memref<1x4x324xbf16, #tpu.memory_space<vmem>>, vector<1x4x16xbf16>,
    %54 = vector.extract_strided_slice %35 {offsets = [0, 0, 144], sizes = [1, 4, 16], strides = [1, 1, 1]} : vector<1x4x256xbf16> to vector<1x4x16xbf16>
    %c0_71 = arith.constant 0 : index
    %c0_72 = arith.constant 0 : index
    %c181 = arith.constant 181 : index
    %55 = vector.load %arg5[%c0_71, %c0_72, %c181] : memref<1x4x324xbf16, #tpu.memory_space<vmem>>, vector<1x4x16xbf16>
    tpu.vector_store %arg5[%c0_71, %c0_72, %c181], %54 {strides = array<i32>} : memref<1x4x324xbf16, #tpu.memory_space<vmem>>, vector<1x4x16xbf16>,
    %56 = vector.extract_strided_slice %35 {offsets = [0, 0, 160], sizes = [1, 4, 16], strides = [1, 1, 1]} : vector<1x4x256xbf16> to vector<1x4x16xbf16>
    %c0_73 = arith.constant 0 : index
    %c0_74 = arith.constant 0 : index
    %c199 = arith.constant 199 : index
    %57 = vector.load %arg5[%c0_73, %c0_74, %c199] : memref<1x4x324xbf16, #tpu.memory_space<vmem>>, vector<1x4x16xbf16>
    tpu.vector_store %arg5[%c0_73, %c0_74, %c199], %56 {strides = array<i32>} : memref<1x4x324xbf16, #tpu.memory_space<vmem>>, vector<1x4x16xbf16>,
    %58 = vector.extract_strided_slice %35 {offsets = [0, 0, 176], sizes = [1, 4, 16], strides = [1, 1, 1]} : vector<1x4x256xbf16> to vector<1x4x16xbf16>
    %c0_75 = arith.constant 0 : index
    %c0_76 = arith.constant 0 : index
    %c217 = arith.constant 217 : index
    %59 = vector.load %arg5[%c0_75, %c0_76, %c217] : memref<1x4x324xbf16, #tpu.memory_space<vmem>>, vector<1x4x16xbf16>
    tpu.vector_store %arg5[%c0_75, %c0_76, %c217], %58 {strides = array<i32>} : memref<1x4x324xbf16, #tpu.memory_space<vmem>>, vector<1x4x16xbf16>,
    %60 = vector.extract_strided_slice %35 {offsets = [0, 0, 192], sizes = [1, 4, 16], strides = [1, 1, 1]} : vector<1x4x256xbf16> to vector<1x4x16xbf16>
    %c0_77 = arith.constant 0 : index
    %c0_78 = arith.constant 0 : index
    %c235 = arith.constant 235 : index
    %61 = vector.load %arg5[%c0_77, %c0_78, %c235] : memref<1x4x324xbf16, #tpu.memory_space<vmem>>, vector<1x4x16xbf16>
    tpu.vector_store %arg5[%c0_77, %c0_78, %c235], %60 {strides = array<i32>} : memref<1x4x324xbf16, #tpu.memory_space<vmem>>, vector<1x4x16xbf16>,
    %62 = vector.extract_strided_slice %35 {offsets = [0, 0, 208], sizes = [1, 4, 16], strides = [1, 1, 1]} : vector<1x4x256xbf16> to vector<1x4x16xbf16>
    %c0_79 = arith.constant 0 : index
    %c0_80 = arith.constant 0 : index
    %c253 = arith.constant 253 : index
    %63 = vector.load %arg5[%c0_79, %c0_80, %c253] : memref<1x4x324xbf16, #tpu.memory_space<vmem>>, vector<1x4x16xbf16>
    tpu.vector_store %arg5[%c0_79, %c0_80, %c253], %62 {strides = array<i32>} : memref<1x4x324xbf16, #tpu.memory_space<vmem>>, vector<1x4x16xbf16>,
    %64 = vector.extract_strided_slice %35 {offsets = [0, 0, 224], sizes = [1, 4, 16], strides = [1, 1, 1]} : vector<1x4x256xbf16> to vector<1x4x16xbf16>
    %c0_81 = arith.constant 0 : index
    %c0_82 = arith.constant 0 : index
    %c271 = arith.constant 271 : index
    %65 = vector.load %arg5[%c0_81, %c0_82, %c271] : memref<1x4x324xbf16, #tpu.memory_space<vmem>>, vector<1x4x16xbf16>
    tpu.vector_store %arg5[%c0_81, %c0_82, %c271], %64 {strides = array<i32>} : memref<1x4x324xbf16, #tpu.memory_space<vmem>>, vector<1x4x16xbf16>,
    %66 = vector.extract_strided_slice %35 {offsets = [0, 0, 240], sizes = [1, 4, 16], strides = [1, 1, 1]} : vector<1x4x256xbf16> to vector<1x4x16xbf16>
    %c0_83 = arith.constant 0 : index
    %c0_84 = arith.constant 0 : index
    %c289 = arith.constant 289 : index
    %67 = vector.load %arg5[%c0_83, %c0_84, %c289] : memref<1x4x324xbf16, #tpu.memory_space<vmem>>, vector<1x4x16xbf16>
    tpu.vector_store %arg5[%c0_83, %c0_84, %c289], %66 {strides = array<i32>} : memref<1x4x324xbf16, #tpu.memory_space<vmem>>, vector<1x4x16xbf16>,
    %c0_85 = arith.constant 0 : index
    %c0_86 = arith.constant 0 : index
    %c0_87 = arith.constant 0 : index
    %68 = vector.load %arg2[%c0_85, %c0_86, %c0_87] : memref<3x8x4xbf16, #tpu.memory_space<vmem>>, vector<3x8x4xbf16>
    %c0_88 = arith.constant 0 : index
    %c0_89 = arith.constant 0 : index
    %69 = vector.load %arg3[%c0_88, %c0_89] : memref<8x1xf32, #tpu.memory_space<vmem>>, vector<8x1xf32>
    %70 = vector.shape_cast %69 : vector<8x1xf32> to vector<8x1xf32>
    %71 = vector.broadcast %70 : vector<8x1xf32> to vector<8x288xf32>
    %c0_90 = arith.constant 0 : index
    %c0_91 = arith.constant 0 : index
    %c0_92 = arith.constant 0 : index
    %72 = vector.load %arg5[%c0_90, %c0_91, %c0_92] : memref<1x4x324xbf16, #tpu.memory_space<vmem>>, vector<1x4x324xbf16>
    %73 = vector.shape_cast %72 : vector<1x4x324xbf16> to vector<4x324xbf16>
    %74 = vector.extract_strided_slice %68 {offsets = [0, 0, 0], sizes = [1, 8, 4], strides = [1, 1, 1]} : vector<3x8x4xbf16> to vector<1x8x4xbf16>
    %75 = vector.shape_cast %74 : vector<1x8x4xbf16> to vector<8x4xbf16>
    %76 = vector.extract_strided_slice %73 {offsets = [0, 0], sizes = [4, 288], strides = [1, 1]} : vector<4x324xbf16> to vector<4x288xbf16>
    %cst_93 = arith.constant dense<0.000000e+00> : vector<8x288xf32>
    %77 = tpu.matmul %75, %76, %cst_93 {dimension_numbers = #tpu.dot_dimension_numbers<[1], [0], [0], [1], [0, 0, 1, 1], [], []>} : vector<8x4xbf16>, vector<4x288xbf16>, vector<8x288xf32> -> vector<8x288xf32>
    %78 = vector.extract_strided_slice %68 {offsets = [1, 0, 0], sizes = [1, 8, 4], strides = [1, 1, 1]} : vector<3x8x4xbf16> to vector<1x8x4xbf16>
    %79 = vector.shape_cast %78 : vector<1x8x4xbf16> to vector<8x4xbf16>
    %80 = vector.extract_strided_slice %73 {offsets = [0, 18], sizes = [4, 288], strides = [1, 1]} : vector<4x324xbf16> to vector<4x288xbf16>
    %cst_94 = arith.constant dense<0.000000e+00> : vector<8x288xf32>
    %81 = tpu.matmul %79, %80, %cst_94 {dimension_numbers = #tpu.dot_dimension_numbers<[1], [0], [0], [1], [0, 0, 1, 1], [], []>} : vector<8x4xbf16>, vector<4x288xbf16>, vector<8x288xf32> -> vector<8x288xf32>
    %82 = arith.addf %77, %81 : vector<8x288xf32>
    %83 = vector.extract_strided_slice %68 {offsets = [2, 0, 0], sizes = [1, 8, 4], strides = [1, 1, 1]} : vector<3x8x4xbf16> to vector<1x8x4xbf16>
    %84 = vector.shape_cast %83 : vector<1x8x4xbf16> to vector<8x4xbf16>
    %85 = vector.extract_strided_slice %73 {offsets = [0, 36], sizes = [4, 288], strides = [1, 1]} : vector<4x324xbf16> to vector<4x288xbf16>
    %cst_95 = arith.constant dense<0.000000e+00> : vector<8x288xf32>
    %86 = tpu.matmul %84, %85, %cst_95 {dimension_numbers = #tpu.dot_dimension_numbers<[1], [0], [0], [1], [0, 0, 1, 1], [], []>} : vector<8x4xbf16>, vector<4x288xbf16>, vector<8x288xf32> -> vector<8x288xf32>
    %87 = arith.addf %82, %86 : vector<8x288xf32>
    %88 = arith.addf %87, %71 : vector<8x288xf32>
    %c0_96 = arith.constant 0 : index
    %c0_97 = arith.constant 0 : index
    %c0_98 = arith.constant 0 : index
    %89 = vector.load %arg4[%c0_96, %c0_97, %c0_98] : memref<1x8x288xf32, #tpu.memory_space<vmem>>, vector<1x8x288xf32>
    %90 = vector.shape_cast %89 : vector<1x8x288xf32> to vector<8x288xf32>
    %91 = vector.shape_cast %88 : vector<8x288xf32> to vector<1x8x288xf32>
    tpu.vector_store %arg4[%c0_96, %c0_97, %c0_98], %91 {strides = array<i32>} : memref<1x8x288xf32, #tpu.memory_space<vmem>>, vector<1x8x288xf32>,
    return
  }
  func.func @transform_0(%arg0: i32) -> (i32, i32, i32) {
    %c0_i32 = arith.constant 0 : i32
    %c0_i32_0 = arith.constant 0 : i32
    %c0_i32_1 = arith.constant 0 : i32
    return %arg0, %c0_i32, %c0_i32_0 : i32, i32, i32
  }
  func.func @transform_1(%arg0: i32) -> (i32, i32, i32) {
    %c0_i32 = arith.constant 0 : i32
    %c0_i32_0 = arith.constant 0 : i32
    %c0_i32_1 = arith.constant 0 : i32
    %c0_i32_2 = arith.constant 0 : i32
    return %c0_i32, %c0_i32_0, %c0_i32_1 : i32, i32, i32
  }
  func.func @transform_2(%arg0: i32) -> (i32, i32) {
    %c0_i32 = arith.constant 0 : i32
    %c0_i32_0 = arith.constant 0 : i32
    %c0_i32_1 = arith.constant 0 : i32
    return %c0_i32, %c0_i32_0 : i32, i32
  }
  func.func @transform_3(%arg0: i32) -> (i32, i32, i32) {
    %c0_i32 = arith.constant 0 : i32
    %c0_i32_0 = arith.constant 0 : i32
    %c0_i32_1 = arith.constant 0 : i32
    return %arg0, %c0_i32, %c0_i32_0 : i32, i32, i32
  }
}

</mosaic_0001>

<llo_original>
// kernel: tpu_custom_call.1
$region0: #{tpu_custom_call.1}
  #allocation0 [shape = 'u32[]', space=smem, size = 0x4, offset = 0x4, fixed_abs, tag = 'smem constant byte address 0x4 - core index']
  #allocation1 [shape = 'u32[144,128]{1,0:T(1,128)}', space=vmem, size = 0x12000, scoped, tag = 'internal scratch']
  #allocation2 [shape = 'bf16[1,4,324]{2,1,0:T(4,128)(2,1)}', space=vmem, size = 0xc00, scoped, tag = 'scratch operand']
  %s0 = inlined_call_operand.vmem [shape: f32[2,4,256], index: 0, kind: input, shape index: {}]
  %s1 = inlined_call_operand.vmem [shape: bf16[3,8,4], index: 1, kind: input, shape index: {}]
  %s2 = inlined_call_operand.vmem [shape: f32[8,1], index: 2, kind: input, shape index: {}]
  %s3 = inlined_call_operand.hbm [shape: f32[2,8,288], index: 3, kind: output, shape index: {}]
  %s4 = sld [smem:[#allocation0]]
  $region45: #{tpu_custom_call.1} parent=0
    _
  %s6 = ssub.s32 1, %s4
  %s7 = scalar_select 0, %s6, %s4
  $region1: #{tpu_custom_call.1} parent=0
    #allocation3 [shape = 'u8[24576]{0}', space=vmem, size = 0x6000, scoped, tag = 'output window, operand 0']
    #allocation4 [shape = 's32[2]{0}', space=sflag, size = 0x8, scoped, tag = 'scoped memory for tpu_custom_call.1']
    %8 = vsyncpa [#allocation4], 0
    %s9 = scalar_lea.sflag [#allocation4], 1
    %10 = vsyncpa %s9, 0
    loop: start=0, step=1, limit=4
    $region2: #{tpu_custom_call.1} parent=1 // loop_pre_header
      _
    $region3: #{tpu_custom_call.1} parent=1 // loop_header
      %s12 = sphi 0, %s16
      %p13 = scmp.ge.s32.totalorder %s12, 4
      %s22 = sphi 0, %s24
      %s25 = sphi 0, %s22
      %s26 = sphi 0, %s25
      %s42 = sphi 0, %s26
      %s46 = sphi 0, %s46
      %s48 = sphi 0, %s46
      %s49 = sphi 0, %s48
      %s63 = sphi 0, %s49
      %s67 = sphi 0, %s67
      %s69 = sphi 0, %s67
      %s70 = sphi 0, %s69
      %s84 = sphi 0, %s70
      %s90 = sphi 0, %s92
      %s93 = sphi 0, %s90
      %s94 = sphi 0, %s93
      %s110 = sphi 0, %s94
    $region4: #{tpu_custom_call.1} parent=1 // loop_header_branch
      %15 = sbr.rel (%p13) target = $region8
    $region5: #{tpu_custom_call.1} parent=1 // loop_body
      %s17 = ssub.s32 %s12, 1
      %s18 = ssub.s32 %s12, 2
      %s19 = sadd.s32 %s12, 1
      %s20 = ssub.s32 %s12, %s19
      %p21 = scmp.eq.s32.totalorder %s20, 0
      %s23 = sadd.s32 %s22, 1
      %s24 = scalar_select %p21, %s22, %s23
      %p27 = pneg %p21
      %p28 = scmp.eq.s32.totalorder %s12, 1
      %p29 = por %p27, %p28
      %p30 = scmp.ne.s32.totalorder %s22, %s25
      %p31 = scmp.eq.s32.totalorder %s12, 0
      %p32 = por %p30, %p31
      %p33 = scmp.ne.s32.totalorder %s22, %s25
      %p34 = scmp.eq.s32.totalorder %s17, 1
      %p35 = por %p33, %p34
      %p36 = scmp.ne.s32.totalorder %s25, %s26
      %p37 = scmp.eq.s32.totalorder %s17, 0
      %p38 = por %p36, %p37
      %p39 = scmp.ne.s32.totalorder %s25, %s26
      %p40 = scmp.eq.s32.totalorder %s18, 1
      %p41 = por %p39, %p40
      %p43 = scmp.ne.s32.totalorder %s26, %s42
      %p44 = scmp.eq.s32.totalorder %s18, 0
      %p45 = por %p43, %p44
      %s47 = sadd.s32 %s46, 1
      %p50 = scmp.eq.s32.totalorder %s12, 1
      %p51 = scmp.ne.s32.totalorder %s46, %s48
      %p52 = scmp.eq.s32.totalorder %s12, 0
      %p53 = por %p51, %p52
      %p54 = scmp.ne.s32.totalorder %s46, %s48
      %p55 = scmp.eq.s32.totalorder %s17, 1
      %p56 = por %p54, %p55
      %p57 = scmp.ne.s32.totalorder %s48, %s49
      %p58 = scmp.eq.s32.totalorder %s17, 0
      %p59 = por %p57, %p58
      %p60 = scmp.ne.s32.totalorder %s48, %s49
      %p61 = scmp.eq.s32.totalorder %s18, 1
      %p62 = por %p60, %p61
      %p64 = scmp.ne.s32.totalorder %s49, %s63
      %p65 = scmp.eq.s32.totalorder %s18, 0
      %p66 = por %p64, %p65
      %s68 = sadd.s32 %s67, 1
      %p71 = scmp.eq.s32.totalorder %s12, 1
      %p72 = scmp.ne.s32.totalorder %s67, %s69
      %p73 = scmp.eq.s32.totalorder %s12, 0
      %p74 = por %p72, %p73
      %p75 = scmp.ne.s32.totalorder %s67, %s69
      %p76 = scmp.eq.s32.totalorder %s17, 1
      %p77 = por %p75, %p76
      %p78 = scmp.ne.s32.totalorder %s69, %s70
      %p79 = scmp.eq.s32.totalorder %s17, 0
      %p80 = por %p78, %p79
      %p81 = scmp.ne.s32.totalorder %s69, %s70
      %p82 = scmp.eq.s32.totalorder %s18, 1
      %p83 = por %p81, %p82
      %p85 = scmp.ne.s32.totalorder %s70, %s84
      %p86 = scmp.eq.s32.totalorder %s18, 0
      %p87 = por %p85, %p86
      %s88 = ssub.s32 %s12, %s19
      %p89 = scmp.eq.s32.totalorder %s88, 0
      %s91 = sadd.s32 %s90, 1
      %s92 = scalar_select %p89, %s90, %s91
      %p95 = pneg %p89
      %p96 = scmp.eq.s32.totalorder %s12, 1
      %p97 = por %p95, %p96
      %p98 = scmp.ne.s32.totalorder %s90, %s93
      %p99 = scmp.eq.s32.totalorder %s12, 0
      %p100 = por %p98, %p99
      %p101 = scmp.ne.s32.totalorder %s90, %s93
      %p102 = scmp.eq.s32.totalorder %s17, 1
      %p103 = por %p101, %p102
      %p104 = scmp.ne.s32.totalorder %s93, %s94
      %p105 = scmp.eq.s32.totalorder %s17, 0
      %p106 = por %p104, %p105
      %p107 = scmp.ne.s32.totalorder %s93, %s94
      %p108 = scmp.eq.s32.totalorder %s18, 1
      %p109 = por %p107, %p108
      %p111 = scmp.ne.s32.totalorder %s94, %s110
      %p112 = scmp.eq.s32.totalorder %s18, 0
      %p113 = por %p111, %p112
      %p114 = scmp.le.s32.totalorder 1, %s12
      %p115 = scmp.lt.s32.totalorder %s12, 3
      %p116 = pnand %p114, %p115
      %p117 = pneg %p116
      // Predicated region
      $region9: #{tpu_custom_call.1} parent=5 // pred_check
        _
      $region10: #{tpu_custom_call.1} parent=5 // pred_check_branch
        %119 = sbr.rel (%p116) target = $region12
      $region11: #{tpu_custom_call.1} parent=5 // pred_region
        %s120 = ssub.s32 %s12, 1
        // Predicated region
        $region13: #{tpu_custom_call.1} parent=11 // pred_check
          %p121 = pneg %p59
        $region14: #{tpu_custom_call.1} parent=11 // pred_check_branch
          %123 = sbr.rel (%p121) target = $region16
        $region15: #{tpu_custom_call.1} parent=11 // pred_region
          _
        $region16: #{tpu_custom_call.1} parent=11 // pred_fallthru
          _
        // Predicated region
        $region17: #{tpu_custom_call.1} parent=11 // pred_check
          %p124 = pneg %p80
        $region18: #{tpu_custom_call.1} parent=11 // pred_check_branch
          %126 = sbr.rel (%p124) target = $region20
        $region19: #{tpu_custom_call.1} parent=11 // pred_region
          _
        $region20: #{tpu_custom_call.1} parent=11 // pred_fallthru
          _
      $region12: #{tpu_custom_call.1} parent=5 // pred_fallthru
        _
      %p127 = scmp.lt.s32.totalorder %s12, 2
      // Predicated region
      $region21: #{tpu_custom_call.1} parent=5 // pred_check
        %p128 = pneg %p127
      $region22: #{tpu_custom_call.1} parent=5 // pred_check_branch
        %130 = sbr.rel (%p128) target = $region24
      $region23: #{tpu_custom_call.1} parent=5 // pred_region
        // Predicated region
        $region25: #{tpu_custom_call.1} parent=23 // pred_check
          %p131 = pneg %p32
        $region26: #{tpu_custom_call.1} parent=23 // pred_check_branch
          %133 = sbr.rel (%p131) target = $region28
        $region27: #{tpu_custom_call.1} parent=23 // pred_region
          %p134 = scmp.lt.s32.totalorder %s12, 1
          %s135 = scalar_select %p134, %s12, 1
          %s136 = smul.addr %s135, 2
          %s137 = smul.addr %s136, 4
          %s138 = scalar_lea.vmem %s0, %s137
        $region28: #{tpu_custom_call.1} parent=23 // pred_fallthru
          _
      $region24: #{tpu_custom_call.1} parent=5 // pred_fallthru
        _
      %p139 = scmp.le.s32.totalorder 1, %s12
      %p140 = scmp.lt.s32.totalorder %s12, 3
      %p141 = pnand %p139, %p140
      %p142 = pneg %p141
      // Predicated region
      $region29: #{tpu_custom_call.1} parent=5 // pred_check
        _
      $region30: #{tpu_custom_call.1} parent=5 // pred_check_branch
        %144 = sbr.rel (%p141) target = $region32
      $region31: #{tpu_custom_call.1} parent=5 // pred_region
        %s145 = ssub.s32 %s12, 1
        %p146 = scmp.lt.s32.totalorder %s17, 1
        %s147 = scalar_select %p146, %s17, 1
        %s148 = smul.addr %s147, 2
        %s149 = smul.addr %s148, 4
        %s150 = scalar_lea.vmem %s0, %s149
        %p151 = pneg %p38
        %p152 = pneg %p35
        %p153 = pneg %p59
        %p154 = pneg %p56
        %p155 = pneg %p80
        %p156 = pneg %p77
        %p157 = pneg %p106
        %p158 = pneg %p103
        %s159 = sand.u32 %s93, 1
        %s160 = scalar_lea.sflag [#allocation4], %s159
        %s161 = sand.u32 %s93, 1
        %s162 = smul.addr %s161, 24
        %s163 = scalar_lea.vmem [#allocation3], %s162
        %p164 = scmp.lt.s32.totalorder %s17, 1
        %s165 = scalar_select %p164, %s17, 1
        %s166 = smul.addr %s165, 2
        %s167 = smul.addr %s166, 4
        %s168 = scalar_lea.vmem %s0, %s167
        %vm170 = vcmask 148480
        %171 = vst.msk [vmem:[#allocation2] sm:$0x3] %vm170, 0
        %vm172 = vcmask 296216
        %173 = vst.msk [vmem:[#allocation2] sm:$0x3] %vm172, 0
        %vm174 = vcmask 443816
        %175 = vst.msk [vmem:[#allocation2] sm:$0x3] %vm174, 0
        %vm176 = vcmask 591416
        %177 = vst.msk [vmem:[#allocation2] sm:$0x3] %vm176, 0
        %vm178 = vcmask 739016
        %179 = vst.msk [vmem:[#allocation2] sm:$0x3] %vm178, 0
        %vm180 = vcmask 886616
        %181 = vst.msk [vmem:[#allocation2] sm:$0x3] %vm180, 0
        %vm182 = vcmask 1034216
        %183 = vst.msk [vmem:[#allocation2] sm:$0x3] %vm182, 0
        %vm184 = vcmask 132216
        %185 = vst.msk [vmem:[#allocation2 + $0x2] sm:$0x3] %vm184, 0
        %vm186 = vcmask 279816
        %187 = vst.msk [vmem:[#allocation2 + $0x2] sm:$0x3] %vm186, 0
        %vm188 = vcmask 427416
        %189 = vst.msk [vmem:[#allocation2 + $0x2] sm:$0x3] %vm188, 0
        %vm190 = vcmask 575016
        %191 = vst.msk [vmem:[#allocation2 + $0x2] sm:$0x3] %vm190, 0
        %vm192 = vcmask 722616
        %193 = vst.msk [vmem:[#allocation2 + $0x2] sm:$0x3] %vm192, 0
        %vm194 = vcmask 870216
        %195 = vst.msk [vmem:[#allocation2 + $0x2] sm:$0x3] %vm194, 0
        %vm196 = vcmask 1017816
        %197 = vst.msk [vmem:[#allocation2 + $0x2] sm:$0x3] %vm196, 0
        %vm198 = vcmask 115816
        %199 = vst.msk [vmem:[#allocation2 + $0x4] sm:$0x3] %vm198, 0
        %vm200 = vcmask 263416
        %201 = vst.msk [vmem:[#allocation2 + $0x4] sm:$0x3] %vm200, 0
        %vm202 = vcmask 550280
        %203 = vst.msk [vmem:[#allocation2 + $0x4] sm:$0x3] %vm202, 0
        %v204 = vld [vmem:[%s168] sm:$0xff]
        %v206 = vcombine.high %v204, %v204
        %v208 = vpack.c.bf16 %v204, %v204
        %v209 = vpack.c.bf16 %v206, %v206
        %v212 = vunpack.c.l.s4 1983009808
        %v213 = vunpack.c.0.s8 %v212
        %v214 = vlaneseq
        %v215 = vshrl.u32 %v214, 7
        %v216 = vsub.s32 %v213, %v215
        %v217 = vrot.slane %v208, %v216
        %218 = vrot.lane.b32.xlu0 %v217, 19
        %v219 = vpop.permute.xlu0 %218
        %vm221 = vcmask 279704
        %222 = vst.msk [vmem:[#allocation2] sm:$0x3] %vm221, %v219
        %223 = vrot.lane.b32.xlu0 %v217, 21
        %v224 = vpop.permute.xlu0 %223
        %vm226 = vcmask 427304
        %227 = vst.msk [vmem:[#allocation2] sm:$0x3] %vm226, %v224
        %228 = vrot.lane.b32.xlu0 %v217, 23
        %v229 = vpop.permute.xlu0 %228
        %vm231 = vcmask 574904
        %232 = vst.msk [vmem:[#allocation2] sm:$0x3] %vm231, %v229
        %233 = vrot.lane.b32.xlu0 %v217, 25
        %v234 = vpop.permute.xlu0 %233
        %vm236 = vcmask 722504
        %237 = vst.msk [vmem:[#allocation2] sm:$0x3] %vm236, %v234
        %238 = vrot.lane.b32.xlu0 %v217, 27
        %v239 = vpop.permute.xlu0 %238
        %vm241 = vcmask 870104
        %242 = vst.msk [vmem:[#allocation2] sm:$0x3] %vm241, %v239
        %243 = vrot.lane.b32.xlu0 %v217, 29
        %v244 = vpop.permute.xlu0 %243
        %vm246 = vcmask 1017704
        %247 = vst.msk [vmem:[#allocation2] sm:$0x3] %vm246, %v244
        %248 = vrot.lane.b32.xlu0 %v217, 31
        %v249 = vpop.permute.xlu0 %248
        %v250 = vrot.slane %v249, 6
        %vm251 = vcmask 252928
        %v252 = vsel %vm251, %v250, %v249
        %vm254 = vcmask 1042424
        %vm255 = vcmask 117762
        %vm256 = vmor %vm255, %vm254
        %257 = vst.msk [vmem:[#allocation2] sm:$0xf] %vm256, %v252
        %258 = vrot.lane.b32.xlu0 %v217, 33
        %v259 = vpop.permute.xlu0 %258
        %vm261 = vcmask 263304
        %262 = vst.msk [vmem:[#allocation2 + $0x2] sm:$0x3] %vm261, %v259
        %v265 = vunpack.c.l.s4 1983009808
        %v266 = vunpack.c.0.s8 %v265
        %v267 = vlaneseq
        %v268 = vshrl.u32 %v267, 7
        %v269 = vsub.s32 %v266, %v268
        %v270 = vrot.slane %v209, %v269
        %271 = vrot.lane.b32.xlu0 %v270, 35
        %v272 = vpop.permute.xlu0 %271
        %vm274 = vcmask 410904
        %275 = vst.msk [vmem:[#allocation2 + $0x2] sm:$0x3] %vm274, %v272
        %276 = vrot.lane.b32.xlu0 %v270, 37
        %v277 = vpop.permute.xlu0 %276
        %vm279 = vcmask 558504
        %280 = vst.msk [vmem:[#allocation2 + $0x2] sm:$0x3] %vm279, %v277
        %281 = vrot.lane.b32.xlu0 %v270, 39
        %v282 = vpop.permute.xlu0 %281
        %vm284 = vcmask 706104
        %285 = vst.msk [vmem:[#allocation2 + $0x2] sm:$0x3] %vm284, %v282
        %286 = vrot.lane.b32.xlu0 %v270, 41
        %v287 = vpop.permute.xlu0 %286
        %vm289 = vcmask 853704
        %290 = vst.msk [vmem:[#allocation2 + $0x2] sm:$0x3] %vm289, %v287
        %291 = vrot.lane.b32.xlu0 %v270, 43
        %v292 = vpop.permute.xlu0 %291
        %vm294 = vcmask 1001304
        %295 = vst.msk [vmem:[#allocation2 + $0x2] sm:$0x3] %vm294, %v292
        %296 = vrot.lane.b32.xlu0 %v270, 45
        %v297 = vpop.permute.xlu0 %296
        %v298 = vrot.slane %v297, 6
        %vm299 = vcmask 367616
        %v300 = vsel %vm299, %v298, %v297
        %vm302 = vcmask 1042408
        %vm303 = vcmask 101378
        %vm304 = vmor %vm303, %vm302
        %305 = vst.msk [vmem:[#allocation2 + $0x2] sm:$0xf] %vm304, %v300
        %306 = vrot.lane.b32.xlu0 %v270, 47
        %v307 = vpop.permute.xlu0 %306
        %vm309 = vcmask 246904
        %310 = vst.msk [vmem:[#allocation2 + $0x4] sm:$0x3] %vm309, %v307
        %311 = vrot.lane.b32.xlu0 %v270, 49
        %v312 = vpop.permute.xlu0 %311
        %vm314 = vcmask 394504
        %315 = vst.msk [vmem:[#allocation2 + $0x4] sm:$0x3] %vm314, %v312
        %v316 = vld [vmem:[%s1] sm:$0xf]
        %v317 = vld [vmem:[%s1 + $0x4] sm:$0xf]
        %v318 = vld [vmem:[%s1 + $0x8] sm:$0xf]
        %v319 = vld [vmem:[%s2] sm:$0xff]
        %321 = vset.pattern.permute.xlu0 0
        %322 = vperm.xlu0 %321, %v319
        %v323 = vpop.permute.xlu0 %322
        %v325 = vld [vmem:[#allocation2] sm:$0x3f]
        %v327 = vcombine.high %v325, %v325
        %v329 = vunpack.c.l.s4 1983009808
        %v330 = vunpack.c.0.s8 %v329
        %v331 = vlaneseq
        %v332 = vshrl.u32 %v331, 7
        %v333 = vsub.s32 %v330, %v332
        %v334 = vrot.slane %v325, %v333
        %v336 = vunpack.c.l.s4 1983009808
        %v337 = vunpack.c.0.s8 %v336
        %v338 = vlaneseq
        %v339 = vshrl.u32 %v338, 7
        %v340 = vsub.s32 %v337, %v339
        %v341 = vrot.slane %v327, %v340
        %v342 = vcombine.high %v334, %v334
        %343 = vrot.lane.b32.xlu0 %v334, 110
        %v344 = vpop.permute.xlu0 %343
        %345 = vrot.lane.b32.xlu0 %v342, 110
        %v346 = vpop.permute.xlu0 %345
        %347 = vrot.lane.b32.xlu0 %v341, 110
        %v348 = vpop.permute.xlu0 %347
        %vm349 = vcmask 900096
        %v350 = vsel %vm349, %v344, %v346
        %v351 = vsel %vm349, %v346, %v348
        %vm352 = vcmask 31744
        %v354 = vsel %vm352, %v317, 0
        %vm356 = vcmask 1041408
        %v358 = vsel %vm356, %v350, 0
        %v361 = vsel %vm356, %v351, 0
        %v364 = vsel %vm356, %v348, 0
        %366 = vmatprep.subr.bf16.mxu0 0
        %367 = vmatpush1.bf16.msra.mxu0 0
        %368 = vmatprep.subr.bf16.mxu0 0
        %369 = vmatpush1.bf16.msra.mxu0 0
        %370 = vmatprep.subr.bf16.mxu0 0
        %371 = vmatpush1.bf16.msra.mxu0 0
        %372 = vmatprep.subr.bf16.mxu0 0
        %373 = vmatpush1.bf16.msra.mxu0 0
        %374 = vmatprep.subr.bf16.mxu0 0
        %375 = vmatpush1.bf16.msra.mxu0 0
        %376 = vmatprep.subr.bf16.mxu0 0
        %377 = vmatpush1.bf16.msra.mxu0 0
        %378 = vmatprep.subr.bf16.mxu0 0
        %379 = vmatpush1.bf16.msra.mxu0 0
        %380 = vmatprep.subr.bf16.mxu0 %v361
        %381 = vmatpush1.bf16.msra.mxu0 %v358
        %382 = vmatprep.subr.bf16.mxu0 0
        %383 = vmatpush2.bf16.msra.mxu0 0
        %384 = vmatprep.subr.bf16.mxu0 0
        %385 = vmatpush2.bf16.msra.mxu0 0
        %386 = vmatprep.subr.bf16.mxu0 0
        %387 = vmatpush2.bf16.msra.mxu0 0
        %388 = vmatprep.subr.bf16.mxu0 0
        %389 = vmatpush2.bf16.msra.mxu0 0
        %390 = vmatprep.subr.bf16.mxu0 0
        %391 = vmatpush2.bf16.msra.mxu0 0
        %392 = vmatprep.subr.bf16.mxu0 0
        %393 = vmatpush2.bf16.msra.mxu0 0
        %394 = vmatprep.subr.bf16.mxu0 0
        %395 = vmatpush2.bf16.msra.mxu0 0
        %396 = vmatprep.subr.bf16.mxu0 0
        %397 = vmatpush2.bf16.msra.mxu0 0
        %398 = vmatprep.mubr.bf16.mxu0 0
        %399 = vmatmul.mubr.bf16.gmra.mxu0 %v354
        %v400 = vpop.f32.mrf.mxu0
        %v401 = vadd.f32 0.0, %v400
        %v402 = vpop.f32.mrf.mxu0
        %v403 = vadd.f32 0.0, %v402
        %v404 = vpop.f32.mrf.mxu0
        %v405 = vpop.f32.mrf.mxu0
        %406 = vdwg.mxu0
        %407 = vmatprep.subr.bf16.mxu0 0
        %408 = vmatpush1.bf16.msra.mxu0 0
        %409 = vmatprep.subr.bf16.mxu0 0
        %410 = vmatpush1.bf16.msra.mxu0 0
        %411 = vmatprep.subr.bf16.mxu0 0
        %412 = vmatpush1.bf16.msra.mxu0 0
        %413 = vmatprep.subr.bf16.mxu0 0
        %414 = vmatpush1.bf16.msra.mxu0 0
        %415 = vmatprep.subr.bf16.mxu0 0
        %416 = vmatpush1.bf16.msra.mxu0 0
        %417 = vmatprep.subr.bf16.mxu0 0
        %418 = vmatpush1.bf16.msra.mxu0 0
        %419 = vmatprep.subr.bf16.mxu0 0
        %420 = vmatpush1.bf16.msra.mxu0 0
        %421 = vmatprep.subr.bf16.mxu0 0
        %422 = vmatpush1.bf16.msra.mxu0 %v364
        %423 = vmatprep.subr.bf16.mxu0 0
        %424 = vmatpush2.bf16.msra.mxu0 0
        %425 = vmatprep.subr.bf16.mxu0 0
        %426 = vmatpush2.bf16.msra.mxu0 0
        %427 = vmatprep.subr.bf16.mxu0 0
        %428 = vmatpush2.bf16.msra.mxu0 0
        %429 = vmatprep.subr.bf16.mxu0 0
        %430 = vmatpush2.bf16.msra.mxu0 0
        %431 = vmatprep.subr.bf16.mxu0 0
        %432 = vmatpush2.bf16.msra.mxu0 0
        %433 = vmatprep.subr.bf16.mxu0 0
        %434 = vmatpush2.bf16.msra.mxu0 0
        %435 = vmatprep.subr.bf16.mxu0 0
        %436 = vmatpush2.bf16.msra.mxu0 0
        %437 = vmatprep.subr.bf16.mxu0 0
        %438 = vmatpush2.bf16.msra.mxu0 0
        %439 = vmatprep.mubr.bf16.mxu0 0
        %440 = vmatmul.mubr.bf16.gmra.mxu0 %v354
        %v441 = vpop.f32.mrf.mxu0
        %v442 = vadd.f32 0.0, %v441
        %v443 = vpop.f32.mrf.mxu0
        %v444 = vpop.f32.mrf.mxu0
        %v445 = vpop.f32.mrf.mxu0
        %446 = vdwg.mxu0
        %v448 = vsel %vm352, %v316, 0
        %v451 = vsel %vm356, %v334, 0
        %v454 = vsel %vm356, %v342, 0
        %v457 = vsel %vm356, %v341, 0
        %459 = vmatprep.subr.bf16.mxu0 0
        %460 = vmatpush1.bf16.msra.mxu0 0
        %461 = vmatprep.subr.bf16.mxu0 0
        %462 = vmatpush1.bf16.msra.mxu0 0
        %463 = vmatprep.subr.bf16.mxu0 0
        %464 = vmatpush1.bf16.msra.mxu0 0
        %465 = vmatprep.subr.bf16.mxu0 0
        %466 = vmatpush1.bf16.msra.mxu0 0
        %467 = vmatprep.subr.bf16.mxu0 0
        %468 = vmatpush1.bf16.msra.mxu0 0
        %469 = vmatprep.subr.bf16.mxu0 0
        %470 = vmatpush1.bf16.msra.mxu0 0
        %471 = vmatprep.subr.bf16.mxu0 0
        %472 = vmatpush1.bf16.msra.mxu0 0
        %473 = vmatprep.subr.bf16.mxu0 %v454
        %474 = vmatpush1.bf16.msra.mxu0 %v451
        %475 = vmatprep.subr.bf16.mxu0 0
        %476 = vmatpush2.bf16.msra.mxu0 0
        %477 = vmatprep.subr.bf16.mxu0 0
        %478 = vmatpush2.bf16.msra.mxu0 0
        %479 = vmatprep.subr.bf16.mxu0 0
        %480 = vmatpush2.bf16.msra.mxu0 0
        %481 = vmatprep.subr.bf16.mxu0 0
        %482 = vmatpush2.bf16.msra.mxu0 0
        %483 = vmatprep.subr.bf16.mxu0 0
        %484 = vmatpush2.bf16.msra.mxu0 0
        %485 = vmatprep.subr.bf16.mxu0 0
        %486 = vmatpush2.bf16.msra.mxu0 0
        %487 = vmatprep.subr.bf16.mxu0 0
        %488 = vmatpush2.bf16.msra.mxu0 0
        %489 = vmatprep.subr.bf16.mxu0 0
        %490 = vmatpush2.bf16.msra.mxu0 0
        %491 = vmatprep.mubr.bf16.mxu0 0
        %492 = vmatmul.mubr.bf16.gmra.mxu0 %v448
        %v493 = vpop.f32.mrf.mxu0
        %v494 = vadd.f32 %v401, %v493
        %v495 = vpop.f32.mrf.mxu0
        %v496 = vadd.f32 %v403, %v495
        %v497 = vpop.f32.mrf.mxu0
        %v498 = vpop.f32.mrf.mxu0
        %499 = vdwg.mxu0
        %500 = vmatprep.subr.bf16.mxu0 0
        %501 = vmatpush1.bf16.msra.mxu0 0
        %502 = vmatprep.subr.bf16.mxu0 0
        %503 = vmatpush1.bf16.msra.mxu0 0
        %504 = vmatprep.subr.bf16.mxu0 0
        %505 = vmatpush1.bf16.msra.mxu0 0
        %506 = vmatprep.subr.bf16.mxu0 0
        %507 = vmatpush1.bf16.msra.mxu0 0
        %508 = vmatprep.subr.bf16.mxu0 0
        %509 = vmatpush1.bf16.msra.mxu0 0
        %510 = vmatprep.subr.bf16.mxu0 0
        %511 = vmatpush1.bf16.msra.mxu0 0
        %512 = vmatprep.subr.bf16.mxu0 0
        %513 = vmatpush1.bf16.msra.mxu0 0
        %514 = vmatprep.subr.bf16.mxu0 0
        %515 = vmatpush1.bf16.msra.mxu0 %v457
        %516 = vmatprep.subr.bf16.mxu0 0
        %517 = vmatpush2.bf16.msra.mxu0 0
        %518 = vmatprep.subr.bf16.mxu0 0
        %519 = vmatpush2.bf16.msra.mxu0 0
        %520 = vmatprep.subr.bf16.mxu0 0
        %521 = vmatpush2.bf16.msra.mxu0 0
        %522 = vmatprep.subr.bf16.mxu0 0
        %523 = vmatpush2.bf16.msra.mxu0 0
        %524 = vmatprep.subr.bf16.mxu0 0
        %525 = vmatpush2.bf16.msra.mxu0 0
        %526 = vmatprep.subr.bf16.mxu0 0
        %527 = vmatpush2.bf16.msra.mxu0 0
        %528 = vmatprep.subr.bf16.mxu0 0
        %529 = vmatpush2.bf16.msra.mxu0 0
        %530 = vmatprep.subr.bf16.mxu0 0
        %531 = vmatpush2.bf16.msra.mxu0 0
        %532 = vmatprep.mubr.bf16.mxu0 0
        %533 = vmatmul.mubr.bf16.gmra.mxu0 %v448
        %v534 = vpop.f32.mrf.mxu0
        %v535 = vadd.f32 %v442, %v534
        %v536 = vpop.f32.mrf.mxu0
        %v537 = vpop.f32.mrf.mxu0
        %v538 = vpop.f32.mrf.mxu0
        %539 = vdwg.mxu0
        %540 = vrot.lane.b32.xlu0 %v334, 92
        %v541 = vpop.permute.xlu0 %540
        %542 = vrot.lane.b32.xlu0 %v342, 92
        %v543 = vpop.permute.xlu0 %542
        %544 = vrot.lane.b32.xlu0 %v341, 92
        %v545 = vpop.permute.xlu0 %544
        %vm546 = vcmask 752640
        %v547 = vsel %vm546, %v541, %v543
        %v548 = vsel %vm546, %v543, %v545
        %v550 = vsel %vm352, %v318, 0
        %v553 = vsel %vm356, %v547, 0
        %v556 = vsel %vm356, %v548, 0
        %v559 = vsel %vm356, %v545, 0
        %561 = vmatprep.subr.bf16.mxu0 0
        %562 = vmatpush1.bf16.msra.mxu0 0
        %563 = vmatprep.subr.bf16.mxu0 0
        %564 = vmatpush1.bf16.msra.mxu0 0
        %565 = vmatprep.subr.bf16.mxu0 0
        %566 = vmatpush1.bf16.msra.mxu0 0
        %567 = vmatprep.subr.bf16.mxu0 0
        %568 = vmatpush1.bf16.msra.mxu0 0
        %569 = vmatprep.subr.bf16.mxu0 0
        %570 = vmatpush1.bf16.msra.mxu0 0
        %571 = vmatprep.subr.bf16.mxu0 0
        %572 = vmatpush1.bf16.msra.mxu0 0
        %573 = vmatprep.subr.bf16.mxu0 0
        %574 = vmatpush1.bf16.msra.mxu0 0
        %575 = vmatprep.subr.bf16.mxu0 %v556
        %576 = vmatpush1.bf16.msra.mxu0 %v553
        %577 = vmatprep.subr.bf16.mxu0 0
        %578 = vmatpush2.bf16.msra.mxu0 0
        %579 = vmatprep.subr.bf16.mxu0 0
        %580 = vmatpush2.bf16.msra.mxu0 0
        %581 = vmatprep.subr.bf16.mxu0 0
        %582 = vmatpush2.bf16.msra.mxu0 0
        %583 = vmatprep.subr.bf16.mxu0 0
        %584 = vmatpush2.bf16.msra.mxu0 0
        %585 = vmatprep.subr.bf16.mxu0 0
        %586 = vmatpush2.bf16.msra.mxu0 0
        %587 = vmatprep.subr.bf16.mxu0 0
        %588 = vmatpush2.bf16.msra.mxu0 0
        %589 = vmatprep.subr.bf16.mxu0 0
        %590 = vmatpush2.bf16.msra.mxu0 0
        %591 = vmatprep.subr.bf16.mxu0 0
        %592 = vmatpush2.bf16.msra.mxu0 0
        %593 = vmatprep.mubr.bf16.mxu0 0
        %594 = vmatmul.mubr.bf16.gmra.mxu0 %v550
        %v595 = vpop.f32.mrf.mxu0
        %v596 = vadd.f32 0.0, %v595
        %v597 = vpop.f32.mrf.mxu0
        %v598 = vadd.f32 0.0, %v597
        %v599 = vpop.f32.mrf.mxu0
        %v600 = vpop.f32.mrf.mxu0
        %601 = vdwg.mxu0
        %602 = vmatprep.subr.bf16.mxu0 0
        %603 = vmatpush1.bf16.msra.mxu0 0
        %604 = vmatprep.subr.bf16.mxu0 0
        %605 = vmatpush1.bf16.msra.mxu0 0
        %606 = vmatprep.subr.bf16.mxu0 0
        %607 = vmatpush1.bf16.msra.mxu0 0
        %608 = vmatprep.subr.bf16.mxu0 0
        %609 = vmatpush1.bf16.msra.mxu0 0
        %610 = vmatprep.subr.bf16.mxu0 0
        %611 = vmatpush1.bf16.msra.mxu0 0
        %612 = vmatprep.subr.bf16.mxu0 0
        %613 = vmatpush1.bf16.msra.mxu0 0
        %614 = vmatprep.subr.bf16.mxu0 0
        %615 = vmatpush1.bf16.msra.mxu0 0
        %616 = vmatprep.subr.bf16.mxu0 0
        %617 = vmatpush1.bf16.msra.mxu0 %v559
        %618 = vmatprep.subr.bf16.mxu0 0
        %619 = vmatpush2.bf16.msra.mxu0 0
        %620 = vmatprep.subr.bf16.mxu0 0
        %621 = vmatpush2.bf16.msra.mxu0 0
        %622 = vmatprep.subr.bf16.mxu0 0
        %623 = vmatpush2.bf16.msra.mxu0 0
        %624 = vmatprep.subr.bf16.mxu0 0
        %625 = vmatpush2.bf16.msra.mxu0 0
        %626 = vmatprep.subr.bf16.mxu0 0
        %627 = vmatpush2.bf16.msra.mxu0 0
        %628 = vmatprep.subr.bf16.mxu0 0
        %629 = vmatpush2.bf16.msra.mxu0 0
        %630 = vmatprep.subr.bf16.mxu0 0
        %631 = vmatpush2.bf16.msra.mxu0 0
        %632 = vmatprep.subr.bf16.mxu0 0
        %633 = vmatpush2.bf16.msra.mxu0 0
        %634 = vmatprep.mubr.bf16.mxu0 0
        %635 = vmatmul.mubr.bf16.gmra.mxu0 %v550
        %v636 = vpop.f32.mrf.mxu0
        %v637 = vadd.f32 0.0, %v636
        %v638 = vpop.f32.mrf.mxu0
        %v639 = vpop.f32.mrf.mxu0
        %v640 = vpop.f32.mrf.mxu0
        %641 = vdwg.mxu0
        %v642 = vadd.f32 %v494, %v596
        %v643 = vadd.f32 %v496, %v598
        %v644 = vadd.f32 %v535, %v637
        %v645 = vadd.f32 %v642, %v323
        %v646 = vadd.f32 %v643, %v323
        %v647 = vadd.f32 %v644, %v323
        %648 = vst [vmem:[%s163] sm:$0xff] %v645
        %649 = vst [vmem:[%s163 + $0x8] sm:$0xff] %v646
        %vm650 = vcmask 261120
        %651 = vst.msk [vmem:[%s163 + $0x10] sm:$0xff] %vm650, %v647
        %s652 = sand.u32 %s93, 1
        %s653 = scalar_lea.sflag [#allocation4], %s652
        %s654 = sand.u32 %s93, 1
        %s655 = smul.addr %s654, 24
        %s656 = scalar_lea.vmem [#allocation3], %s655
        // Predicated region
        $region33: #{tpu_custom_call.1} parent=31 // pred_check
          %p657 = pneg %p103
        $region34: #{tpu_custom_call.1} parent=31 // pred_check_branch
          %659 = sbr.rel (%p657) target = $region36
        $region35: #{tpu_custom_call.1} parent=31 // pred_region
          %s661 = ssub.s32 384, 384
          %662 = vsyncadd %s653, %s661
          %s663 = smul.addr %s17, 3
          %s664 = smul.addr %s663, 128
          %s665 = scalar_lea.hbm %s3, %s664
          %s667 = sshll.u32 %s656, 4
          %s668 = int_to_ptr.vmem [resolvable:$true] %s667
          %670 = dma.vmem_to_hbm [thread:$0]  %s668, 384, %s665, %s653
        $region36: #{tpu_custom_call.1} parent=31 // pred_fallthru
          _
      $region32: #{tpu_custom_call.1} parent=5 // pred_fallthru
        _
      %p671 = scmp.le.s32.totalorder 2, %s12
      // Predicated region
      $region37: #{tpu_custom_call.1} parent=5 // pred_check
        %p672 = pneg %p671
      $region38: #{tpu_custom_call.1} parent=5 // pred_check_branch
        %674 = sbr.rel (%p672) target = $region40
      $region39: #{tpu_custom_call.1} parent=5 // pred_region
        %s675 = ssub.s32 %s12, 2
        // Predicated region
        $region41: #{tpu_custom_call.1} parent=39 // pred_check
          %p676 = pneg %p109
        $region42: #{tpu_custom_call.1} parent=39 // pred_check_branch
          %678 = sbr.rel (%p676) target = $region44
        $region43: #{tpu_custom_call.1} parent=39 // pred_region
          %s679 = sand.u32 %s94, 1
          %s680 = scalar_lea.sflag [#allocation4], %s679
          %s681 = sand.u32 %s94, 1
          %s682 = smul.addr %s681, 24
          %s683 = scalar_lea.vmem [#allocation3], %s682
          %684 = dma.done %s680, 384
        $region44: #{tpu_custom_call.1} parent=39 // pred_fallthru
          _
      $region40: #{tpu_custom_call.1} parent=5 // pred_fallthru
        _
    $region6: #{tpu_custom_call.1} parent=1 // loop_footer
      %s16 = sadd.s32 1, %s12
    $region7: #{tpu_custom_call.1} parent=1 // loop_footer_branch
      %11 = sbr.rel target = $region3
    $region8: #{tpu_custom_call.1} parent=1 // loop_exit
      _
    %685 = vsyncpa [#allocation4], 1
    %s686 = scalar_lea.sflag [#allocation4], 1
    %687 = vsyncpa %s686, 1

</llo_original>
